<compile_context>
chip_gen: v7x
topology: tpu7x:2x2x1
jax: 0.10.0
libtpu: 0.0.40
codegen_flags: <defaults>
</compile_context>

<pallas_src>
import jax
import jax.numpy as jnp
from jax.experimental import pallas as pl
from jax.experimental.pallas import tpu as pltpu


def linear_kernel(x_ref, w_ref, b_ref, o_ref):
    # x_ref: (B, IN) VMEM f32
    # w_ref: (OUT, IN) VMEM f32   (torch nn.Linear weight layout, no transpose)
    # b_ref: (1, OUT) SMEM f32    (scalar reads)
    # o_ref: (B, OUT) VMEM
    x = x_ref[...]                                        # (B, IN)
    out_features = o_ref.shape[1]
    for j in range(out_features):                         # static unroll, OUT == 2
        wj = w_ref[j:j + 1, :]                            # (1, IN), static sublane slice
        # VPU broadcast-multiply + lane-axis reduce -> one output column.
        col = jnp.sum(x * wj, axis=-1, keepdims=True)     # (B, 1) f32
        o_ref[:, j:j + 1] = (col + b_ref[0, j]).astype(o_ref.dtype)


def simple_model_forward(x, w, b):
    """Pallas implementation of nn.Linear(in_features, out_features).forward."""
    B, IN = x.shape
    OUT, IN_w = w.shape
    assert IN == IN_w, "weight / input feature mismatch"
    b2d = b.reshape(1, OUT).astype(jnp.float32)
    return pl.pallas_call(
        linear_kernel,
        out_shape=jax.ShapeDtypeStruct((B, OUT), x.dtype),
        # grid=() -> single invocation; whole (tiny) arrays as blocks, no pipelining.
        in_specs=[
            pl.BlockSpec(memory_space=pltpu.MemorySpace.VMEM),   # x
            pl.BlockSpec(memory_space=pltpu.MemorySpace.VMEM),   # W (OUT, IN)
            pl.BlockSpec(memory_space=pltpu.MemorySpace.SMEM),   # bias scalars
        ],
        out_specs=pl.BlockSpec(memory_space=pltpu.MemorySpace.VMEM),
    )(x, w, b2d)


if __name__ == "__main__":
    key = jax.random.PRNGKey(0)
    kx, kw, kb = jax.random.split(key, 3)

    batch, in_features, out_features = 8, 10, 2

    # Deterministic parameter init (mimics nn.Linear uniform(-1/sqrt(in), 1/sqrt(in)))
    bound = 1.0 / jnp.sqrt(jnp.float32(in_features))
    w = jax.random.uniform(kw, (out_features, in_features), jnp.float32, -bound, bound)
    b = jax.random.uniform(kb, (out_features,), jnp.float32, -bound, bound)

    x = jax.random.normal(kx, (batch, in_features), jnp.float32)

    y = simple_model_forward(x, w, b)
    jax.block_until_ready(y)

    # Sanity check against plain JAX reference.
    y_ref = x @ w.T + b
    assert y.shape == (batch, out_features)
    assert jnp.allclose(y, y_ref, atol=1e-5, rtol=1e-5)

    print("KERNEL_OK")
</pallas_src>

<mosaic_0001>
module attributes {stable_mosaic.version = 11 : i64} {
  func.func @linear_kernel(%arg0: memref<8x10xf32, #tpu.memory_space<vmem>>, %arg1: memref<2x10xf32, #tpu.memory_space<vmem>>, %arg2: memref<1x2xf32, #tpu.memory_space<smem>>, %arg3: memref<8x2xf32, #tpu.memory_space<vmem>>) attributes {dimension_semantics = [], scalar_prefetch = 0 : i64, scratch_operands = 0 : i64, tpu.core_type = #tpu.core_type<tc>} {
    %c0 = arith.constant 0 : index
    %c0_0 = arith.constant 0 : index
    %0 = vector.load %arg0[%c0, %c0_0] : memref<8x10xf32, #tpu.memory_space<vmem>>, vector<8x10xf32>
    %c0_1 = arith.constant 0 : index
    %c0_2 = arith.constant 0 : index
    %1 = vector.load %arg1[%c0_1, %c0_2] : memref<2x10xf32, #tpu.memory_space<vmem>>, vector<1x10xf32>
    %2 = vector.broadcast %1 : vector<1x10xf32> to vector<8x10xf32>
    %3 = arith.mulf %0, %2 : vector<8x10xf32>
    %cst = arith.constant dense<0.000000e+00> : vector<8xf32>
    %4 = vector.multi_reduction <add>, %3, %cst [1] : vector<8x10xf32> to vector<8xf32>
    %5 = vector.shape_cast %4 : vector<8xf32> to vector<8x1xf32>
    %c0_3 = arith.constant 0 : index
    %c0_4 = arith.constant 0 : index
    %6 = memref.load %arg2[%c0_3, %c0_4] : memref<1x2xf32, #tpu.memory_space<smem>>
    %7 = vector.broadcast %6 : f32 to vector<8x1xf32>
    %8 = arith.addf %5, %7 : vector<8x1xf32>
    %c0_5 = arith.constant 0 : index
    %c0_6 = arith.constant 0 : index
    %9 = vector.load %arg3[%c0_5, %c0_6] : memref<8x2xf32, #tpu.memory_space<vmem>>, vector<8x1xf32>
    tpu.vector_store %arg3[%c0_5, %c0_6], %8 {strides = array<i32>} : memref<8x2xf32, #tpu.memory_space<vmem>>, vector<8x1xf32>,
    %c1 = arith.constant 1 : index
    %c0_7 = arith.constant 0 : index
    %10 = vector.load %arg1[%c1, %c0_7] : memref<2x10xf32, #tpu.memory_space<vmem>>, vector<1x10xf32>
    %11 = vector.broadcast %10 : vector<1x10xf32> to vector<8x10xf32>
    %12 = arith.mulf %0, %11 : vector<8x10xf32>
    %cst_8 = arith.constant dense<0.000000e+00> : vector<8xf32>
    %13 = vector.multi_reduction <add>, %12, %cst_8 [1] : vector<8x10xf32> to vector<8xf32>
    %14 = vector.shape_cast %13 : vector<8xf32> to vector<8x1xf32>
    %c0_9 = arith.constant 0 : index
    %c1_10 = arith.constant 1 : index
    %15 = memref.load %arg2[%c0_9, %c1_10] : memref<1x2xf32, #tpu.memory_space<smem>>
    %16 = vector.broadcast %15 : f32 to vector<8x1xf32>
    %17 = arith.addf %14, %16 : vector<8x1xf32>
    %c0_11 = arith.constant 0 : index
    %c1_12 = arith.constant 1 : index
    %18 = vector.load %arg3[%c0_11, %c1_12] : memref<8x2xf32, #tpu.memory_space<vmem>>, vector<8x1xf32>
    tpu.vector_store %arg3[%c0_11, %c1_12], %17 {strides = array<i32>} : memref<8x2xf32, #tpu.memory_space<vmem>>, vector<8x1xf32>,
    return
  }
}

</mosaic_0001>

<llo_original>
// kernel: tpu_custom_call.1
$region0: #{tpu_custom_call.1}
  #allocation0 [shape = 'u32[]', space=smem, size = 0x4, offset = 0x4, fixed_abs, tag = 'smem constant byte address 0x4 - core index']
  #allocation1 [shape = 'u32[144,128]{1,0:T(1,128)}', space=vmem, size = 0x12000, scoped, tag = 'internal scratch']
  %s0 = inlined_call_operand.hbm [shape: f32[8,10], index: 0, kind: input, shape index: {}]
  %s1 = inlined_call_operand.vmem [shape: f32[2,10], index: 1, kind: input, shape index: {}]
  %s2 = inlined_call_operand.vmem [shape: f32[1,2], index: 2, kind: input, shape index: {}]
  %s3 = inlined_call_operand.vmem [shape: f32[8,2], index: 3, kind: output, shape index: {}]
  %s4 = sld [smem:[#allocation0]]
  $region30: #{tpu_custom_call.1} parent=0
    _
  %s6 = ssub.s32 1, %s4
  %s7 = scalar_select 0, %s6, %s4
  $region1: #{tpu_custom_call.1} parent=0
    #allocation2 [shape = 'u8[4096]{0}', space=vmem, size = 0x1000, scoped, tag = 'input window, operand 0, single buffered']
    #allocation3 [shape = 's32[1]{0}', space=sflag, size = 0x4, scoped, tag = 'scoped memory for tpu_custom_call.1']
    #allocation4 [shape = 's32[1]{0}', space=sflag, size = 0x4, scoped, tag = 'scoped memory for tpu_custom_call.1']
    #allocation5 [shape = 'u8[512]{0}', space=smem, size = 0x200, scoped, tag = 'input window, operand 2, single buffered']
    %8 = vsyncpa [#allocation3], 0
    %9 = vsyncpa [#allocation4], 0
    // Predicated region
    $region2: #{tpu_custom_call.1} parent=1 // pred_check
      _
    $region3: #{tpu_custom_call.1} parent=1 // pred_check_branch
      %11 = sbr.rel (0) target = $region5
    $region4: #{tpu_custom_call.1} parent=1 // pred_region
      %s13 = ssub.s32 128, 128
      %14 = vsyncadd [#allocation3], %s13
      %s16 = sshll.u32 [#allocation2], 4
      %s17 = int_to_ptr.vmem [resolvable:$true] %s16
      %19 = dma.hbm_to_vmem [thread:$0]  %s0, 128, %s17, [#allocation3]
    $region5: #{tpu_custom_call.1} parent=1 // pred_fallthru
      _
    // Predicated region
    $region6: #{tpu_custom_call.1} parent=1 // pred_check
      _
    $region7: #{tpu_custom_call.1} parent=1 // pred_check_branch
      %21 = sbr.rel (0) target = $region9
    $region8: #{tpu_custom_call.1} parent=1 // pred_region
      _
    $region9: #{tpu_custom_call.1} parent=1 // pred_fallthru
      _
    // Predicated region
    $region10: #{tpu_custom_call.1} parent=1 // pred_check
      _
    $region11: #{tpu_custom_call.1} parent=1 // pred_check_branch
      %23 = sbr.rel (0) target = $region13
    $region12: #{tpu_custom_call.1} parent=1 // pred_region
      %s25 = ssub.s32 16, 16
      %26 = vsyncadd [#allocation4], %s25
      %s28 = sshll.u32 %s2, 4
      %s29 = int_to_ptr.vmem [resolvable:$true] %s28
      %31 = dma.vmem_to_smem %s29, 16, [#allocation5], [#allocation4]
    $region13: #{tpu_custom_call.1} parent=1 // pred_fallthru
      _
    // Predicated region
    $region14: #{tpu_custom_call.1} parent=1 // pred_check
      _
    $region15: #{tpu_custom_call.1} parent=1 // pred_check_branch
      %33 = sbr.rel (0) target = $region17
    $region16: #{tpu_custom_call.1} parent=1 // pred_region
      %34 = dma.done [#allocation3], 128
    $region17: #{tpu_custom_call.1} parent=1 // pred_fallthru
      _
    // Predicated region
    $region18: #{tpu_custom_call.1} parent=1 // pred_check
      _
    $region19: #{tpu_custom_call.1} parent=1 // pred_check_branch
      %36 = sbr.rel (0) target = $region21
    $region20: #{tpu_custom_call.1} parent=1 // pred_region
      %37 = dma.done [#allocation4], 16
    $region21: #{tpu_custom_call.1} parent=1 // pred_fallthru
      _
    %38 = sfence
    %v39 = vld [vmem:[#allocation2] sm:$0xff]
    %v40 = vld [vmem:[%s1] sm:$0x1]
    %v41 = vlaneseq
    %v42 = vshrl.u32 %v41, 7
    %v43 = vsub.s32 0, %v42
    %v44 = vrot.slane %v40, %v43
    %v45 = vmul.f32 %v39, %v44
    %vm46 = vcmask 80896
    %v47 = vsel %vm46, %v45, 0.0
    %48 = vadd.xlane.f32.xlu0 %v47
    %v49 = vpop.xlane.xlu0 %48
    %s50 = sld [smem:[#allocation5]]
    %v51 = vstv %s50
    %v52 = vadd.f32 %v49, %v51
    %vm53 = vcmask 7168
    %54 = vst.msk [vmem:[%s3] sm:$0xff] %vm53, %v52
    %v55 = vld [vmem:[%s1 + $0x1] sm:$0x1]
    %v56 = vlaneseq
    %v57 = vshrl.u32 %v56, 7
    %v58 = vsub.s32 0, %v57
    %v59 = vrot.slane %v55, %v58
    %v60 = vmul.f32 %v39, %v59
    %v61 = vsel %vm46, %v60, 0.0
    %62 = vadd.xlane.f32.xlu0 %v61
    %v63 = vpop.xlane.xlu0 %62
    %s64 = sld [smem:[#allocation5 + $0x1]]
    %v65 = vstv %s64
    %v66 = vadd.f32 %v63, %v65
    %vm67 = vcmask 15368
    %68 = vst.msk [vmem:[%s3] sm:$0xff] %vm67, %v66
    // Predicated region
    $region22: #{tpu_custom_call.1} parent=1 // pred_check
      _
    $region23: #{tpu_custom_call.1} parent=1 // pred_check_branch
      %70 = sbr.rel (0) target = $region25
    $region24: #{tpu_custom_call.1} parent=1 // pred_region
      _
    $region25: #{tpu_custom_call.1} parent=1 // pred_fallthru
      _
    // Predicated region
    $region26: #{tpu_custom_call.1} parent=1 // pred_check
      _
    $region27: #{tpu_custom_call.1} parent=1 // pred_check_branch
      %72 = sbr.rel (0) target = $region29
    $region28: #{tpu_custom_call.1} parent=1 // pred_region
      _
    $region29: #{tpu_custom_call.1} parent=1 // pred_fallthru
      _
    %73 = vsyncpa [#allocation3], 1
    %74 = vsyncpa [#allocation4], 1

</llo_original>
